<compile_context>
chip_gen: v7x
topology: tpu7x:2x2x1
jax: 0.10.0
libtpu: 0.0.40
codegen_flags: <defaults>
</compile_context>

<pallas_src>
import functools

import jax
import jax.numpy as jnp
from jax.experimental import pallas as pl
from jax.experimental.pallas import tpu as pltpu

IN_DIM = 310              # input feature count (no feature-dim padding of x)
H1, H2, H3 = 256, 128, 64
C_PAD = 8                 # logits padded to 8 lanes (narrow f32 store)
TB_MAX = 4096             # max batch-tile rows per grid step
MIN_GRID_STEPS = 4        # aim for >=4 steps so v7x shards the batch across TCs


def _round_up(n, m):
    return ((n + m - 1) // m) * m


def _leaky_relu(x, slope=0.01):
    # single VPU max instead of cmp+select; applied on the f32 accumulator.
    return jnp.maximum(x, slope * x)


def ddc_kernel(x_ref,
               w1_ref, b1_ref,
               w2_ref, b2_ref,
               w3_ref, b3_ref,
               wc_ref, bc_ref,
               out_ref):
    """One batch tile: full 4-layer MLP fused.  Weights are VMEM-resident."""
    x = x_ref[...]                                                # (TB, 310) bf16

    # Linear(310, 256) + LeakyReLU (f32 accumulate)
    h = jnp.dot(x, w1_ref[...], preferred_element_type=jnp.float32) + b1_ref[...]
    h = _leaky_relu(h).astype(jnp.bfloat16)

    # Linear(256, 128) + LeakyReLU
    h = jnp.dot(h, w2_ref[...], preferred_element_type=jnp.float32) + b2_ref[...]
    h = _leaky_relu(h).astype(jnp.bfloat16)

    # Linear(128, 64) + LeakyReLU
    h = jnp.dot(h, w3_ref[...], preferred_element_type=jnp.float32) + b3_ref[...]
    h = _leaky_relu(h).astype(jnp.bfloat16)

    # cls_fc: Linear(64, C) into an 8-lane f32 slab.
    logits = jnp.dot(h, wc_ref[...], preferred_element_type=jnp.float32) + bc_ref[...]
    out_ref[...] = logits.astype(out_ref.dtype)


def ddc_forward(x, params, num_categories=4):
    """x: (B, 310) float32 -> (logits (B, num_categories) f32, loss=0.0)."""
    w1, b1, w2, b2, w3, b3, wc, bc = params
    B, Kin = x.shape
    assert Kin == IN_DIM

    # Batch tiling: 16-aligned (bf16 min tile), capped at TB_MAX, and sized so
    # large batches get at least MIN_GRID_STEPS grid steps (v7x megacore).
    b16 = _round_up(B, 16)
    tb_target = max(16, _round_up(pl.cdiv(b16, MIN_GRID_STEPS), 16))
    TB = min(TB_MAX, tb_target)
    B_pad = _round_up(b16, TB)

    # Single fused cast+pad: bf16 stream, batch rows only (no feature pad).
    x_prep = jnp.pad(x.astype(jnp.bfloat16), ((0, B_pad - B), (0, 0)))

    grid = (B_pad // TB,)

    def resident(shape):
        # Weight/bias blocks: same block every grid step -> fetched once.
        return pl.BlockSpec(shape, lambda i, _s=len(shape): (0,) * _s)

    w_elems = IN_DIM * H1 + H1 * H2 + H2 * H3 + H3 * C_PAD
    flops = 2 * B_pad * w_elems
    bytes_accessed = (B_pad * (IN_DIM * 2 + C_PAD * 4)     # x bf16 in, logits f32 out
                      + w_elems * 2                        # bf16 weights
                      + (H1 + H2 + H3 + C_PAD) * 4)        # f32 biases

    logits_pad = pl.pallas_call(
        ddc_kernel,
        out_shape=jax.ShapeDtypeStruct((B_pad, C_PAD), jnp.float32),
        grid=grid,
        in_specs=[
            pl.BlockSpec((TB, IN_DIM), lambda i: (i, 0)),   # x tile (pipelined)
            resident((IN_DIM, H1)), resident((1, H1)),
            resident((H1, H2)),     resident((1, H2)),
            resident((H2, H3)),     resident((1, H3)),
            resident((H3, C_PAD)),  resident((1, C_PAD)),
        ],
        out_specs=pl.BlockSpec((TB, C_PAD), lambda i: (i, 0)),
        compiler_params=pltpu.CompilerParams(
            dimension_semantics=("parallel",),
            vmem_limit_bytes=32 * 1024 * 1024),
        cost_estimate=pl.CostEstimate(
            flops=flops, transcendentals=0, bytes_accessed=bytes_accessed),
    )(x_prep, w1, b1, w2, b2, w3, b3, wc, bc)

    logits = logits_pad[:B, :num_categories]
    loss = jnp.float32(0.0)   # TODO(synk): MMD loss only exists on the training path.
    return logits, loss


def ddc_reference(x, params, num_categories=4):
    """Pure-JAX reference with the same bf16 weight/activation quantization."""
    w1, b1, w2, b2, w3, b3, wc, bc = params
    h = x.astype(jnp.bfloat16)
    for w, b in ((w1, b1), (w2, b2), (w3, b3)):
        h = jnp.dot(h, w, preferred_element_type=jnp.float32) + b
        h = jnp.maximum(h, 0.01 * h).astype(jnp.bfloat16)
    logits = jnp.dot(h, wc, preferred_element_type=jnp.float32) + bc
    return logits[:, :num_categories]


def init_params(key, num_categories=4):
    """PyTorch-style uniform init; weights bf16 (cls head padded to 8 lanes)."""
    dims = [(IN_DIM, H1), (H1, H2), (H2, H3), (H3, num_categories)]
    out_pads = [0, 0, 0, C_PAD - num_categories]
    params = []
    for (fan_in, fan_out), pad_out in zip(dims, out_pads):
        kw, kb, key = jax.random.split(key, 3)
        bound = 1.0 / (fan_in ** 0.5)  # same scale PyTorch nn.Linear uses
        w = jax.random.uniform(kw, (fan_in, fan_out), jnp.float32, -bound, bound)
        b = jax.random.uniform(kb, (1, fan_out), jnp.float32, -bound, bound)
        w = jnp.pad(w, ((0, 0), (0, pad_out))).astype(jnp.bfloat16)
        b = jnp.pad(b, ((0, 0), (0, pad_out))).astype(jnp.float32)
        params += [w, b]
    return tuple(params)


if __name__ == "__main__":
    key = jax.random.PRNGKey(0)
    k_x, k_p = jax.random.split(key)

    batch = 8
    num_categories = 4

    x = jax.random.normal(k_x, (batch, IN_DIM), dtype=jnp.float32)
    params = init_params(k_p, num_categories=num_categories)

    fwd = jax.jit(functools.partial(ddc_forward, num_categories=num_categories))
    logits, loss = fwd(x, params)
    jax.block_until_ready(logits)
    jax.block_until_ready(loss)

    assert logits.shape == (batch, num_categories)
    assert logits.dtype == jnp.float32
    assert bool(jnp.all(jnp.isfinite(logits)))

    ref = ddc_reference(x, params, num_categories=num_categories)
    assert bool(jnp.allclose(logits, ref, atol=5e-2, rtol=5e-2))

    print("KERNEL_OK")
</pallas_src>

<mosaic_0001>
module attributes {stable_mosaic.version = 11 : i64} {
  func.func @ddc_kernel(%arg0: i32, %arg1: memref<16x310xbf16, #tpu.memory_space<vmem>>, %arg2: memref<310x256xbf16, #tpu.memory_space<vmem>>, %arg3: memref<1x256xf32, #tpu.memory_space<vmem>>, %arg4: memref<256x128xbf16, #tpu.memory_space<vmem>>, %arg5: memref<1x128xf32, #tpu.memory_space<vmem>>, %arg6: memref<128x64xbf16, #tpu.memory_space<vmem>>, %arg7: memref<1x64xf32, #tpu.memory_space<vmem>>, %arg8: memref<64x8xbf16, #tpu.memory_space<vmem>>, %arg9: memref<1x8xf32, #tpu.memory_space<vmem>>, %arg10: memref<16x8xf32, #tpu.memory_space<vmem>>) attributes {dimension_semantics = [#tpu.dimension_semantics<parallel>], iteration_bounds = array<i64: 1>, scalar_prefetch = 0 : i64, scratch_operands = 0 : i64, tpu.core_type = #tpu.core_type<tc>, window_params = [{transform_indices = @transform_0, window_bounds = array<i64: 16, 310>}, {pipeline_mode = #tpu.pipeline_mode<synchronous>, transform_indices = @transform_1, window_bounds = array<i64: 310, 256>}, {pipeline_mode = #tpu.pipeline_mode<synchronous>, transform_indices = @transform_2, window_bounds = array<i64: 1, 256>}, {pipeline_mode = #tpu.pipeline_mode<synchronous>, transform_indices = @transform_3, window_bounds = array<i64: 256, 128>}, {pipeline_mode = #tpu.pipeline_mode<synchronous>, transform_indices = @transform_4, window_bounds = array<i64: 1, 128>}, {pipeline_mode = #tpu.pipeline_mode<synchronous>, transform_indices = @transform_5, window_bounds = array<i64: 128, 64>}, {pipeline_mode = #tpu.pipeline_mode<synchronous>, transform_indices = @transform_6, window_bounds = array<i64: 1, 64>}, {pipeline_mode = #tpu.pipeline_mode<synchronous>, transform_indices = @transform_7, window_bounds = array<i64: 64, 8>}, {pipeline_mode = #tpu.pipeline_mode<synchronous>, transform_indices = @transform_8, window_bounds = array<i64: 1, 8>}, {transform_indices = @transform_9, window_bounds = array<i64: 16, 8>}]} {
    %c0 = arith.constant 0 : index
    %c0_0 = arith.constant 0 : index
    %0 = vector.load %arg1[%c0, %c0_0] : memref<16x310xbf16, #tpu.memory_space<vmem>>, vector<16x310xbf16>
    %c0_1 = arith.constant 0 : index
    %c0_2 = arith.constant 0 : index
    %1 = vector.load %arg2[%c0_1, %c0_2] : memref<310x256xbf16, #tpu.memory_space<vmem>>, vector<310x256xbf16>
    %cst = arith.constant dense<0.000000e+00> : vector<16x256xf32>
    %2 = tpu.matmul %0, %1, %cst {dimension_numbers = #tpu.dot_dimension_numbers<[1], [0], [0], [1], [0, 0, 1, 1], [], []>} : vector<16x310xbf16>, vector<310x256xbf16>, vector<16x256xf32> -> vector<16x256xf32>
    %c0_3 = arith.constant 0 : index
    %c0_4 = arith.constant 0 : index
    %3 = vector.load %arg3[%c0_3, %c0_4] : memref<1x256xf32, #tpu.memory_space<vmem>>, vector<1x256xf32>
    %4 = vector.broadcast %3 : vector<1x256xf32> to vector<16x256xf32>
    %5 = arith.addf %2, %4 : vector<16x256xf32>
    %cst_5 = arith.constant 0.00999999977 : f32
    %6 = vector.broadcast %cst_5 : f32 to vector<16x256xf32>
    %7 = arith.mulf %6, %5 : vector<16x256xf32>
    %8 = arith.maximumf %5, %7 : vector<16x256xf32>
    %9 = arith.truncf %8 : vector<16x256xf32> to vector<16x256xbf16>
    %c0_6 = arith.constant 0 : index
    %c0_7 = arith.constant 0 : index
    %10 = vector.load %arg4[%c0_6, %c0_7] : memref<256x128xbf16, #tpu.memory_space<vmem>>, vector<256x128xbf16>
    %cst_8 = arith.constant dense<0.000000e+00> : vector<16x128xf32>
    %11 = tpu.matmul %9, %10, %cst_8 {dimension_numbers = #tpu.dot_dimension_numbers<[1], [0], [0], [1], [0, 0, 1, 1], [], []>} : vector<16x256xbf16>, vector<256x128xbf16>, vector<16x128xf32> -> vector<16x128xf32>
    %c0_9 = arith.constant 0 : index
    %c0_10 = arith.constant 0 : index
    %12 = vector.load %arg5[%c0_9, %c0_10] : memref<1x128xf32, #tpu.memory_space<vmem>>, vector<1x128xf32>
    %13 = vector.broadcast %12 : vector<1x128xf32> to vector<16x128xf32>
    %14 = arith.addf %11, %13 : vector<16x128xf32>
    %cst_11 = arith.constant 0.00999999977 : f32
    %15 = vector.broadcast %cst_11 : f32 to vector<16x128xf32>
    %16 = arith.mulf %15, %14 : vector<16x128xf32>
    %17 = arith.maximumf %14, %16 : vector<16x128xf32>
    %18 = arith.truncf %17 : vector<16x128xf32> to vector<16x128xbf16>
    %c0_12 = arith.constant 0 : index
    %c0_13 = arith.constant 0 : index
    %19 = vector.load %arg6[%c0_12, %c0_13] : memref<128x64xbf16, #tpu.memory_space<vmem>>, vector<128x64xbf16>
    %cst_14 = arith.constant dense<0.000000e+00> : vector<16x64xf32>
    %20 = tpu.matmul %18, %19, %cst_14 {dimension_numbers = #tpu.dot_dimension_numbers<[1], [0], [0], [1], [0, 0, 1, 1], [], []>} : vector<16x128xbf16>, vector<128x64xbf16>, vector<16x64xf32> -> vector<16x64xf32>
    %c0_15 = arith.constant 0 : index
    %c0_16 = arith.constant 0 : index
    %21 = vector.load %arg7[%c0_15, %c0_16] : memref<1x64xf32, #tpu.memory_space<vmem>>, vector<1x64xf32>
    %22 = vector.broadcast %21 : vector<1x64xf32> to vector<16x64xf32>
    %23 = arith.addf %20, %22 : vector<16x64xf32>
    %cst_17 = arith.constant 0.00999999977 : f32
    %24 = vector.broadcast %cst_17 : f32 to vector<16x64xf32>
    %25 = arith.mulf %24, %23 : vector<16x64xf32>
    %26 = arith.maximumf %23, %25 : vector<16x64xf32>
    %27 = arith.truncf %26 : vector<16x64xf32> to vector<16x64xbf16>
    %c0_18 = arith.constant 0 : index
    %c0_19 = arith.constant 0 : index
    %28 = vector.load %arg8[%c0_18, %c0_19] : memref<64x8xbf16, #tpu.memory_space<vmem>>, vector<64x8xbf16>
    %cst_20 = arith.constant dense<0.000000e+00> : vector<16x8xf32>
    %29 = tpu.matmul %27, %28, %cst_20 {dimension_numbers = #tpu.dot_dimension_numbers<[1], [0], [0], [1], [0, 0, 1, 1], [], []>} : vector<16x64xbf16>, vector<64x8xbf16>, vector<16x8xf32> -> vector<16x8xf32>
    %c0_21 = arith.constant 0 : index
    %c0_22 = arith.constant 0 : index
    %30 = vector.load %arg9[%c0_21, %c0_22] : memref<1x8xf32, #tpu.memory_space<vmem>>, vector<1x8xf32>
    %31 = vector.broadcast %30 : vector<1x8xf32> to vector<16x8xf32>
    %32 = arith.addf %29, %31 : vector<16x8xf32>
    %c0_23 = arith.constant 0 : index
    %c0_24 = arith.constant 0 : index
    %33 = vector.load %arg10[%c0_23, %c0_24] : memref<16x8xf32, #tpu.memory_space<vmem>>, vector<16x8xf32>
    tpu.vector_store %arg10[%c0_23, %c0_24], %32 {strides = array<i32>} : memref<16x8xf32, #tpu.memory_space<vmem>>, vector<16x8xf32>,
    return
  }
  func.func @transform_0(%arg0: i32) -> (i32, i32) {
    %c0_i32 = arith.constant 0 : i32
    %c0_i32_0 = arith.constant 0 : i32
    return %arg0, %c0_i32 : i32, i32
  }
  func.func @transform_1(%arg0: i32) -> (i32, i32) {
    %c0_i32 = arith.constant 0 : i32
    %c0_i32_0 = arith.constant 0 : i32
    %c0_i32_1 = arith.constant 0 : i32
    return %c0_i32, %c0_i32_0 : i32, i32
  }
  func.func @transform_2(%arg0: i32) -> (i32, i32) {
    %c0_i32 = arith.constant 0 : i32
    %c0_i32_0 = arith.constant 0 : i32
    %c0_i32_1 = arith.constant 0 : i32
    return %c0_i32, %c0_i32_0 : i32, i32
  }
  func.func @transform_3(%arg0: i32) -> (i32, i32) {
    %c0_i32 = arith.constant 0 : i32
    %c0_i32_0 = arith.constant 0 : i32
    %c0_i32_1 = arith.constant 0 : i32
    return %c0_i32, %c0_i32_0 : i32, i32
  }
  func.func @transform_4(%arg0: i32) -> (i32, i32) {
    %c0_i32 = arith.constant 0 : i32
    %c0_i32_0 = arith.constant 0 : i32
    %c0_i32_1 = arith.constant 0 : i32
    return %c0_i32, %c0_i32_0 : i32, i32
  }
  func.func @transform_5(%arg0: i32) -> (i32, i32) {
    %c0_i32 = arith.constant 0 : i32
    %c0_i32_0 = arith.constant 0 : i32
    %c0_i32_1 = arith.constant 0 : i32
    return %c0_i32, %c0_i32_0 : i32, i32
  }
  func.func @transform_6(%arg0: i32) -> (i32, i32) {
    %c0_i32 = arith.constant 0 : i32
    %c0_i32_0 = arith.constant 0 : i32
    %c0_i32_1 = arith.constant 0 : i32
    return %c0_i32, %c0_i32_0 : i32, i32
  }
  func.func @transform_7(%arg0: i32) -> (i32, i32) {
    %c0_i32 = arith.constant 0 : i32
    %c0_i32_0 = arith.constant 0 : i32
    %c0_i32_1 = arith.constant 0 : i32
    return %c0_i32, %c0_i32_0 : i32, i32
  }
  func.func @transform_8(%arg0: i32) -> (i32, i32) {
    %c0_i32 = arith.constant 0 : i32
    %c0_i32_0 = arith.constant 0 : i32
    %c0_i32_1 = arith.constant 0 : i32
    return %c0_i32, %c0_i32_0 : i32, i32
  }
  func.func @transform_9(%arg0: i32) -> (i32, i32) {
    %c0_i32 = arith.constant 0 : i32
    %c0_i32_0 = arith.constant 0 : i32
    return %arg0, %c0_i32 : i32, i32
  }
}

</mosaic_0001>

<llo_original>
// kernel: ddc_forward.1
$region0: #{ddc_forward.1}
  #allocation0 [shape = 'u32[]', space=smem, size = 0x4, offset = 0x4, fixed_abs, tag = 'smem constant byte address 0x4 - core index']
  #allocation1 [shape = 'u32[144,128]{1,0:T(1,128)}', space=vmem, size = 0x12000, scoped, tag = 'internal scratch']
  %s0 = inlined_call_operand.vmem [shape: bf16[16,310], index: 0, kind: input, shape index: {}]
  %s1 = inlined_call_operand.hbm [shape: bf16[310,256], index: 1, kind: input, shape index: {}]
  %s2 = inlined_call_operand.vmem [shape: f32[1,256], index: 2, kind: input, shape index: {}]
  %s3 = inlined_call_operand.vmem [shape: bf16[256,128], index: 3, kind: input, shape index: {}]
  %s4 = inlined_call_operand.vmem [shape: f32[1,128], index: 4, kind: input, shape index: {}]
  %s5 = inlined_call_operand.vmem [shape: bf16[128,64], index: 5, kind: input, shape index: {}]
  %s6 = inlined_call_operand.vmem [shape: f32[1,64], index: 6, kind: input, shape index: {}]
  %s7 = inlined_call_operand.vmem [shape: bf16[64,8], index: 7, kind: input, shape index: {}]
  %s8 = inlined_call_operand.vmem [shape: f32[1,8], index: 8, kind: input, shape index: {}]
  %s9 = inlined_call_operand.vmem [shape: f32[16,8], index: 9, kind: output, shape index: {}]
  %s10 = sld [smem:[#allocation0]]
  $region50: #{ddc_forward.1} parent=0
    _
  %s12 = ssub.s32 1, %s10
  %s13 = scalar_select 0, %s12, %s10
  $region1: #{ddc_forward.1} parent=0
    #allocation2 [shape = 'u8[159744]{0}', space=vmem, size = 0x27000, scoped, tag = 'input window, operand 1, single buffered']
    #allocation3 [shape = 's32[1]{0}', space=sflag, size = 0x4, scoped, tag = 'scoped memory for ddc_forward.1']
    %14 = vsyncpa [#allocation3], 0
    // Predicated region
    $region2: #{ddc_forward.1} parent=1 // pred_check
      _
    $region3: #{ddc_forward.1} parent=1 // pred_check_branch
      %16 = sbr.rel (0) target = $region5
    $region4: #{ddc_forward.1} parent=1 // pred_region
      _
    $region5: #{ddc_forward.1} parent=1 // pred_fallthru
      _
    // Predicated region
    $region6: #{ddc_forward.1} parent=1 // pred_check
      _
    $region7: #{ddc_forward.1} parent=1 // pred_check_branch
      %18 = sbr.rel (0) target = $region9
    $region8: #{ddc_forward.1} parent=1 // pred_region
      %s20 = ssub.s32 4992, 4992
      %21 = vsyncadd [#allocation3], %s20
      %s22 = sshll.u32 [#allocation2], 4
      %s23 = int_to_ptr.vmem [resolvable:$true] %s22
      %28 = dma.hbm_to_vmem [thread:$0]  %s1, 4992, %s23, [#allocation3], 128, 128, 8
    $region9: #{ddc_forward.1} parent=1 // pred_fallthru
      _
    // Predicated region
    $region10: #{ddc_forward.1} parent=1 // pred_check
      _
    $region11: #{ddc_forward.1} parent=1 // pred_check_branch
      %30 = sbr.rel (0) target = $region13
    $region12: #{ddc_forward.1} parent=1 // pred_region
      _
    $region13: #{ddc_forward.1} parent=1 // pred_fallthru
      _
    // Predicated region
    $region14: #{ddc_forward.1} parent=1 // pred_check
      _
    $region15: #{ddc_forward.1} parent=1 // pred_check_branch
      %32 = sbr.rel (0) target = $region17
    $region16: #{ddc_forward.1} parent=1 // pred_region
      _
    $region17: #{ddc_forward.1} parent=1 // pred_fallthru
      _
    // Predicated region
    $region18: #{ddc_forward.1} parent=1 // pred_check
      _
    $region19: #{ddc_forward.1} parent=1 // pred_check_branch
      %34 = sbr.rel (0) target = $region21
    $region20: #{ddc_forward.1} parent=1 // pred_region
      _
    $region21: #{ddc_forward.1} parent=1 // pred_fallthru
      _
    // Predicated region
    $region22: #{ddc_forward.1} parent=1 // pred_check
      _
    $region23: #{ddc_forward.1} parent=1 // pred_check_branch
      %36 = sbr.rel (0) target = $region25
    $region24: #{ddc_forward.1} parent=1 // pred_region
      _
    $region25: #{ddc_forward.1} parent=1 // pred_fallthru
      _
    // Predicated region
    $region26: #{ddc_forward.1} parent=1 // pred_check
      _
    $region27: #{ddc_forward.1} parent=1 // pred_check_branch
      %38 = sbr.rel (0) target = $region29
    $region28: #{ddc_forward.1} parent=1 // pred_region
      _
    $region29: #{ddc_forward.1} parent=1 // pred_fallthru
      _
    // Predicated region
    $region30: #{ddc_forward.1} parent=1 // pred_check
      _
    $region31: #{ddc_forward.1} parent=1 // pred_check_branch
      %40 = sbr.rel (0) target = $region33
    $region32: #{ddc_forward.1} parent=1 // pred_region
      _
    $region33: #{ddc_forward.1} parent=1 // pred_fallthru
      _
    // Predicated region
    $region34: #{ddc_forward.1} parent=1 // pred_check
      _
    $region35: #{ddc_forward.1} parent=1 // pred_check_branch
      %42 = sbr.rel (0) target = $region37
    $region36: #{ddc_forward.1} parent=1 // pred_region
      _
    $region37: #{ddc_forward.1} parent=1 // pred_fallthru
      _
    // Predicated region
    $region38: #{ddc_forward.1} parent=1 // pred_check
      _
    $region39: #{ddc_forward.1} parent=1 // pred_check_branch
      %44 = sbr.rel (0) target = $region41
    $region40: #{ddc_forward.1} parent=1 // pred_region
      %45 = dma.done [#allocation3], 4992
    $region41: #{ddc_forward.1} parent=1 // pred_fallthru
      _
    %v47 = vld [vmem:[%s0] sm:$0xff]
    %v48 = vld [vmem:[%s0 + $0x8] sm:$0xf]
    %v49 = vld [vmem:[%s0 + $0xc] sm:$0xff]
    %v50 = vld [vmem:[%s0 + $0x14] sm:$0xf]
    %v51 = vld [vmem:[#allocation2] sm:$0xff]
    %v52 = vld [vmem:[#allocation2 + $0x8] sm:$0xff]
    %v53 = vld [vmem:[#allocation2 + $0x10] sm:$0xff]
    %v54 = vld [vmem:[#allocation2 + $0x18] sm:$0xff]
    %v55 = vld [vmem:[#allocation2 + $0x20] sm:$0xff]
    %v56 = vld [vmem:[#allocation2 + $0x28] sm:$0xff]
    %v57 = vld [vmem:[#allocation2 + $0x30] sm:$0xff]
    %v58 = vld [vmem:[#allocation2 + $0x38] sm:$0xff]
    %v59 = vld [vmem:[#allocation2 + $0x40] sm:$0xff]
    %v60 = vld [vmem:[#allocation2 + $0x48] sm:$0xff]
    %v61 = vld [vmem:[#allocation2 + $0x50] sm:$0xff]
    %v62 = vld [vmem:[#allocation2 + $0x58] sm:$0xff]
    %v63 = vld [vmem:[#allocation2 + $0x60] sm:$0xff]
    %v64 = vld [vmem:[#allocation2 + $0x68] sm:$0xff]
    %v65 = vld [vmem:[#allocation2 + $0x70] sm:$0xff]
    %v66 = vld [vmem:[#allocation2 + $0x78] sm:$0xff]
    %v67 = vld [vmem:[#allocation2 + $0x80] sm:$0xff]
    %v68 = vld [vmem:[#allocation2 + $0x88] sm:$0xff]
    %v69 = vld [vmem:[#allocation2 + $0x90] sm:$0xff]
    %v70 = vld [vmem:[#allocation2 + $0x98] sm:$0xff]
    %v71 = vld [vmem:[#allocation2 + $0xa0] sm:$0xff]
    %v72 = vld [vmem:[#allocation2 + $0xa8] sm:$0xff]
    %v73 = vld [vmem:[#allocation2 + $0xb0] sm:$0xff]
    %v74 = vld [vmem:[#allocation2 + $0xb8] sm:$0xff]
    %v75 = vld [vmem:[#allocation2 + $0xc0] sm:$0xff]
    %v76 = vld [vmem:[#allocation2 + $0xc8] sm:$0xff]
    %v77 = vld [vmem:[#allocation2 + $0xd0] sm:$0xff]
    %v78 = vld [vmem:[#allocation2 + $0xd8] sm:$0xff]
    %v79 = vld [vmem:[#allocation2 + $0xe0] sm:$0xff]
    %v80 = vld [vmem:[#allocation2 + $0xe8] sm:$0xff]
    %v81 = vld [vmem:[#allocation2 + $0xf0] sm:$0xff]
    %v82 = vld [vmem:[#allocation2 + $0xf8] sm:$0xff]
    %v83 = vld [vmem:[#allocation2 + $0x100] sm:$0xff]
    %v84 = vld [vmem:[#allocation2 + $0x108] sm:$0xff]
    %v85 = vld [vmem:[#allocation2 + $0x110] sm:$0xff]
    %v86 = vld [vmem:[#allocation2 + $0x118] sm:$0xff]
    %v87 = vld [vmem:[#allocation2 + $0x120] sm:$0xff]
    %v88 = vld [vmem:[#allocation2 + $0x128] sm:$0xff]
    %v89 = vld [vmem:[#allocation2 + $0x130] sm:$0x77]
    %v90 = vld [vmem:[%s2] sm:$0x3]
    %v92 = vlaneseq
    %v93 = vshrl.u32 %v92, 7
    %v94 = vsub.s32 0, %v93
    %v95 = vrot.slane %v90, %v94
    %v96 = vlaneseq
    %v97 = vshrl.u32 %v96, 7
    %v98 = vsub.s32 1, %v97
    %v99 = vrot.slane %v90, %v98
    %v106 = vunpack.c.l.b16 %v47
    %v107 = vunpack.c.h.b16 %v47
    %v108 = vunpack.c.l.b16 %v48
    %v109 = vunpack.c.l.b16 %v49
    %v110 = vunpack.c.h.b16 %v49
    %v111 = vunpack.c.l.b16 %v50
    %v112 = vpack.c.b16 %v109, %v106
    %v113 = vpack.c.b16 %v110, %v107
    %v114 = vpack.c.b16 %v111, %v108
    %v156 = vunpack.c.l.b16 %v51
    %v157 = vunpack.c.h.b16 %v51
    %v158 = vunpack.c.l.b16 %v52
    %v159 = vunpack.c.h.b16 %v52
    %v160 = vunpack.c.l.b16 %v53
    %v161 = vunpack.c.h.b16 %v53
    %v162 = vunpack.c.l.b16 %v54
    %v163 = vunpack.c.h.b16 %v54
    %v164 = vunpack.c.l.b16 %v55
    %v165 = vunpack.c.h.b16 %v55
    %v166 = vunpack.c.l.b16 %v56
    %v167 = vunpack.c.h.b16 %v56
    %v168 = vunpack.c.l.b16 %v57
    %v169 = vunpack.c.h.b16 %v57
    %v170 = vunpack.c.l.b16 %v58
    %v171 = vunpack.c.h.b16 %v58
    %v172 = vunpack.c.l.b16 %v59
    %v173 = vunpack.c.h.b16 %v59
    %v174 = vunpack.c.l.b16 %v60
    %v175 = vunpack.c.h.b16 %v60
    %v176 = vunpack.c.l.b16 %v61
    %v177 = vunpack.c.h.b16 %v61
    %v178 = vunpack.c.l.b16 %v62
    %v179 = vunpack.c.h.b16 %v62
    %v180 = vunpack.c.l.b16 %v63
    %v181 = vunpack.c.h.b16 %v63
    %v182 = vunpack.c.l.b16 %v64
    %v183 = vunpack.c.h.b16 %v64
    %v184 = vunpack.c.l.b16 %v65
    %v185 = vunpack.c.h.b16 %v65
    %v186 = vunpack.c.l.b16 %v66
    %v187 = vunpack.c.h.b16 %v66
    %v188 = vunpack.c.l.b16 %v67
    %v189 = vunpack.c.h.b16 %v67
    %v190 = vunpack.c.l.b16 %v68
    %v191 = vunpack.c.h.b16 %v68
    %v192 = vunpack.c.l.b16 %v69
    %v193 = vunpack.c.h.b16 %v69
    %v194 = vunpack.c.l.b16 %v70
    %v195 = vunpack.c.h.b16 %v70
    %v196 = vunpack.c.l.b16 %v71
    %v197 = vunpack.c.h.b16 %v71
    %v198 = vunpack.c.l.b16 %v72
    %v199 = vunpack.c.h.b16 %v72
    %v200 = vunpack.c.l.b16 %v73
    %v201 = vunpack.c.h.b16 %v73
    %v202 = vunpack.c.l.b16 %v74
    %v203 = vunpack.c.h.b16 %v74
    %v204 = vunpack.c.l.b16 %v75
    %v205 = vunpack.c.h.b16 %v75
    %v206 = vunpack.c.l.b16 %v76
    %v207 = vunpack.c.h.b16 %v76
    %v208 = vunpack.c.l.b16 %v77
    %v209 = vunpack.c.h.b16 %v77
    %v210 = vunpack.c.l.b16 %v78
    %v211 = vunpack.c.h.b16 %v78
    %v212 = vunpack.c.l.b16 %v79
    %v213 = vunpack.c.h.b16 %v79
    %v214 = vunpack.c.l.b16 %v80
    %v215 = vunpack.c.h.b16 %v80
    %v216 = vunpack.c.l.b16 %v81
    %v217 = vunpack.c.h.b16 %v81
    %v218 = vunpack.c.l.b16 %v82
    %v219 = vunpack.c.h.b16 %v82
    %v220 = vunpack.c.l.b16 %v83
    %v221 = vunpack.c.h.b16 %v83
    %v222 = vunpack.c.l.b16 %v84
    %v223 = vunpack.c.h.b16 %v84
    %v224 = vunpack.c.l.b16 %v85
    %v225 = vunpack.c.h.b16 %v85
    %v226 = vunpack.c.l.b16 %v86
    %v227 = vunpack.c.h.b16 %v86
    %v228 = vunpack.c.l.b16 %v87
    %v229 = vunpack.c.h.b16 %v87
    %v230 = vunpack.c.l.b16 %v88
    %v231 = vunpack.c.h.b16 %v88
    %v232 = vunpack.c.l.b16 %v89
    %v233 = vunpack.c.h.b16 %v89
    %v234 = vpack.c.b16 %v158, %v156
    %v235 = vpack.c.b16 %v159, %v157
    %v236 = vpack.c.b16 %v162, %v160
    %v237 = vpack.c.b16 %v163, %v161
    %v238 = vpack.c.b16 %v166, %v164
    %v239 = vpack.c.b16 %v167, %v165
    %v240 = vpack.c.b16 %v170, %v168
    %v241 = vpack.c.b16 %v171, %v169
    %v242 = vpack.c.b16 %v174, %v172
    %v243 = vpack.c.b16 %v175, %v173
    %v244 = vpack.c.b16 %v178, %v176
    %v245 = vpack.c.b16 %v179, %v177
    %v246 = vpack.c.b16 %v182, %v180
    %v247 = vpack.c.b16 %v183, %v181
    %v248 = vpack.c.b16 %v186, %v184
    %v249 = vpack.c.b16 %v187, %v185
    %v250 = vpack.c.b16 %v190, %v188
    %v251 = vpack.c.b16 %v191, %v189
    %v252 = vpack.c.b16 %v194, %v192
    %v253 = vpack.c.b16 %v195, %v193
    %v254 = vpack.c.b16 %v198, %v196
    %v255 = vpack.c.b16 %v199, %v197
    %v256 = vpack.c.b16 %v202, %v200
    %v257 = vpack.c.b16 %v203, %v201
    %v258 = vpack.c.b16 %v206, %v204
    %v259 = vpack.c.b16 %v207, %v205
    %v260 = vpack.c.b16 %v210, %v208
    %v261 = vpack.c.b16 %v211, %v209
    %v262 = vpack.c.b16 %v214, %v212
    %v263 = vpack.c.b16 %v215, %v213
    %v264 = vpack.c.b16 %v218, %v216
    %v265 = vpack.c.b16 %v219, %v217
    %v266 = vpack.c.b16 %v222, %v220
    %v267 = vpack.c.b16 %v223, %v221
    %v268 = vpack.c.b16 %v226, %v224
    %v269 = vpack.c.b16 %v227, %v225
    %v270 = vpack.c.b16 %v230, %v228
    %v271 = vpack.c.b16 %v231, %v229
    %v272 = vpack.c.b16 %v232, %v232
    %v273 = vpack.c.b16 %v233, %v233
    %vm312 = vcmask 441344
    %v314 = vsel %vm312, %v114, 0
    %vm316 = vcmask 1042432
    %v318 = vsel %vm316, %v272, 0
    %v321 = vsel %vm316, %v273, 0
    %323 = vmatprep.subr.bf16.mxu0 %v235
    %324 = vmatpush1.bf16.msra.mxu0 %v234
    %325 = vmatprep.subr.bf16.mxu0 %v237
    %326 = vmatpush1.bf16.msra.mxu0 %v236
    %327 = vmatprep.subr.bf16.mxu0 %v239
    %328 = vmatpush1.bf16.msra.mxu0 %v238
    %329 = vmatprep.subr.bf16.mxu0 %v241
    %330 = vmatpush1.bf16.msra.mxu0 %v240
    %331 = vmatprep.subr.bf16.mxu0 %v243
    %332 = vmatpush1.bf16.msra.mxu0 %v242
    %333 = vmatprep.subr.bf16.mxu0 %v245
    %334 = vmatpush1.bf16.msra.mxu0 %v244
    %335 = vmatprep.subr.bf16.mxu0 %v247
    %336 = vmatpush1.bf16.msra.mxu0 %v246
    %337 = vmatprep.subr.bf16.mxu0 %v249
    %338 = vmatpush1.bf16.msra.mxu0 %v248
    %339 = vmatprep.subr.bf16.mxu0 %v251
    %340 = vmatpush1.bf16.msra.mxu0 %v250
    %341 = vmatprep.subr.bf16.mxu0 %v253
    %342 = vmatpush1.bf16.msra.mxu0 %v252
    %343 = vmatprep.subr.bf16.mxu0 %v255
    %344 = vmatpush1.bf16.msra.mxu0 %v254
    %345 = vmatprep.subr.bf16.mxu0 %v257
    %346 = vmatpush1.bf16.msra.mxu0 %v256
    %347 = vmatprep.subr.bf16.mxu0 %v259
    %348 = vmatpush1.bf16.msra.mxu0 %v258
    %349 = vmatprep.subr.bf16.mxu0 %v261
    %350 = vmatpush1.bf16.msra.mxu0 %v260
    %351 = vmatprep.subr.bf16.mxu0 %v263
    %352 = vmatpush1.bf16.msra.mxu0 %v262
    %353 = vmatprep.subr.bf16.mxu0 %v265
    %354 = vmatpush1.bf16.msra.mxu0 %v264
    %355 = vmatprep.mubr.bf16.mxu0 %v113
    %356 = vmatmul.mubr.bf16.gmra.mrb[0].mxu0 %v112
    %v357 = vpop.f32.mrb[0].mxu0
    %v358 = vadd.f32 %v95, %v357
    %v359 = vpop.f32.mrb[0].mxu0
    %v360 = vadd.f32 %v99, %v359
    %v361 = vpop.f32.mrb[0].mxu0
    %v362 = vadd.f32 %v95, %v361
    %v363 = vpop.f32.mrb[0].mxu0
    %v364 = vadd.f32 %v99, %v363
    %365 = vdwg.mxu0
    %366 = vmatprep.subr.bf16.mxu0 %v267
    %367 = vmatpush1.bf16.msra.mxu0 %v266
    %368 = vmatprep.subr.bf16.mxu0 %v269
    %369 = vmatpush1.bf16.msra.mxu0 %v268
    %370 = vmatprep.subr.bf16.mxu0 %v271
    %371 = vmatpush1.bf16.msra.mxu0 %v270
    %372 = vmatprep.subr.bf16.mxu0 %v321
    %373 = vmatpush1.bf16.msra.mxu0 %v318
    %374 = vmatprep.subr.bf16.mxu0 0
    %375 = vmatpush1.bf16.msra.mxu0 0
    %376 = vmatprep.subr.bf16.mxu0 0
    %377 = vmatpush1.bf16.msra.mxu0 0
    %378 = vmatprep.subr.bf16.mxu0 0
    %379 = vmatpush1.bf16.msra.mxu0 0
    %380 = vmatprep.subr.bf16.mxu0 0
    %381 = vmatpush1.bf16.msra.mxu0 0
    %382 = vmatprep.subr.bf16.mxu0 0
    %383 = vmatpush1.bf16.msra.mxu0 0
    %384 = vmatprep.subr.bf16.mxu0 0
    %385 = vmatpush1.bf16.msra.mxu0 0
    %386 = vmatprep.subr.bf16.mxu0 0
    %387 = vmatpush1.bf16.msra.mxu0 0
    %388 = vmatprep.subr.bf16.mxu0 0
    %389 = vmatpush1.bf16.msra.mxu0 0
    %390 = vmatprep.subr.bf16.mxu0 0
    %391 = vmatpush1.bf16.msra.mxu0 0
    %392 = vmatprep.subr.bf16.mxu0 0
    %393 = vmatpush1.bf16.msra.mxu0 0
    %394 = vmatprep.subr.bf16.mxu0 0
    %395 = vmatpush1.bf16.msra.mxu0 0
    %396 = vmatprep.subr.bf16.mxu0 0
    %397 = vmatpush1.bf16.msra.mxu0 0
    %398 = vmatprep.mubr.bf16.mxu0 0
    %399 = vmatmul.mubr.bf16.gmra.mrb[0].mxu0 %v314
    %v400 = vpop.f32.mrb[0].mxu0
    %v401 = vadd.f32 %v358, %v400
    %v402 = vpop.f32.mrb[0].mxu0
    %v403 = vadd.f32 %v360, %v402
    %v404 = vpop.f32.mrb[0].mxu0
    %v405 = vadd.f32 %v362, %v404
    %v406 = vpop.f32.mrb[0].mxu0
    %v407 = vadd.f32 %v364, %v406
    %408 = vdwg.mxu0
    %v409 = vmul.f32 %v401, 0.01
    %v410 = vmul.f32 %v403, 0.01
    %v411 = vmul.f32 %v405, 0.01
    %v412 = vmul.f32 %v407, 0.01
    %v413 = vmax.f32 %v401, %v409
    %v414 = vmax.f32 %v403, %v410
    %v415 = vmax.f32 %v405, %v411
    %v416 = vmax.f32 %v407, %v412
    %v417 = vpack.c.bf16 %v415, %v413
    %v418 = vpack.c.bf16 %v416, %v414
    %v419 = vld [vmem:[%s3] sm:$0xf]
    %v420 = vld [vmem:[%s3 + $0x4] sm:$0xf]
    %v421 = vld [vmem:[%s3 + $0x8] sm:$0xf]
    %v422 = vld [vmem:[%s3 + $0xc] sm:$0xf]
    %v423 = vld [vmem:[%s3 + $0x10] sm:$0xf]
    %v424 = vld [vmem:[%s3 + $0x14] sm:$0xf]
    %v425 = vld [vmem:[%s3 + $0x18] sm:$0xf]
    %v426 = vld [vmem:[%s3 + $0x1c] sm:$0xf]
    %v427 = vld [vmem:[%s3 + $0x20] sm:$0xf]
    %v428 = vld [vmem:[%s3 + $0x24] sm:$0xf]
    %v429 = vld [vmem:[%s3 + $0x28] sm:$0xf]
    %v430 = vld [vmem:[%s3 + $0x2c] sm:$0xf]
    %v431 = vld [vmem:[%s3 + $0x30] sm:$0xf]
    %v432 = vld [vmem:[%s3 + $0x34] sm:$0xf]
    %v433 = vld [vmem:[%s3 + $0x38] sm:$0xf]
    %v434 = vld [vmem:[%s3 + $0x3c] sm:$0xf]
    %v435 = vld [vmem:[%s3 + $0x40] sm:$0xf]
    %v436 = vld [vmem:[%s3 + $0x44] sm:$0xf]
    %v437 = vld [vmem:[%s3 + $0x48] sm:$0xf]
    %v438 = vld [vmem:[%s3 + $0x4c] sm:$0xf]
    %v439 = vld [vmem:[%s3 + $0x50] sm:$0xf]
    %v440 = vld [vmem:[%s3 + $0x54] sm:$0xf]
    %v441 = vld [vmem:[%s3 + $0x58] sm:$0xf]
    %v442 = vld [vmem:[%s3 + $0x5c] sm:$0xf]
    %v443 = vld [vmem:[%s3 + $0x60] sm:$0xf]
    %v444 = vld [vmem:[%s3 + $0x64] sm:$0xf]
    %v445 = vld [vmem:[%s3 + $0x68] sm:$0xf]
    %v446 = vld [vmem:[%s3 + $0x6c] sm:$0xf]
    %v447 = vld [vmem:[%s3 + $0x70] sm:$0xf]
    %v448 = vld [vmem:[%s3 + $0x74] sm:$0xf]
    %v449 = vld [vmem:[%s3 + $0x78] sm:$0xf]
    %v450 = vld [vmem:[%s3 + $0x7c] sm:$0xf]
    %v451 = vld [vmem:[%s4] sm:$0x1]
    %v453 = vlaneseq
    %v454 = vshrl.u32 %v453, 7
    %v455 = vsub.s32 0, %v454
    %v456 = vrot.slane %v451, %v455
    %v490 = vunpack.c.l.b16 %v419
    %v491 = vunpack.c.l.b16 %v420
    %v492 = vunpack.c.l.b16 %v421
    %v493 = vunpack.c.l.b16 %v422
    %v494 = vunpack.c.l.b16 %v423
    %v495 = vunpack.c.l.b16 %v424
    %v496 = vunpack.c.l.b16 %v425
    %v497 = vunpack.c.l.b16 %v426
    %v498 = vunpack.c.l.b16 %v427
    %v499 = vunpack.c.l.b16 %v428
    %v500 = vunpack.c.l.b16 %v429
    %v501 = vunpack.c.l.b16 %v430
    %v502 = vunpack.c.l.b16 %v431
    %v503 = vunpack.c.l.b16 %v432
    %v504 = vunpack.c.l.b16 %v433
    %v505 = vunpack.c.l.b16 %v434
    %v506 = vunpack.c.l.b16 %v435
    %v507 = vunpack.c.l.b16 %v436
    %v508 = vunpack.c.l.b16 %v437
    %v509 = vunpack.c.l.b16 %v438
    %v510 = vunpack.c.l.b16 %v439
    %v511 = vunpack.c.l.b16 %v440
    %v512 = vunpack.c.l.b16 %v441
    %v513 = vunpack.c.l.b16 %v442
    %v514 = vunpack.c.l.b16 %v443
    %v515 = vunpack.c.l.b16 %v444
    %v516 = vunpack.c.l.b16 %v445
    %v517 = vunpack.c.l.b16 %v446
    %v518 = vunpack.c.l.b16 %v447
    %v519 = vunpack.c.l.b16 %v448
    %v520 = vunpack.c.l.b16 %v449
    %v521 = vunpack.c.l.b16 %v450
    %v522 = vpack.c.b16 %v491, %v490
    %v523 = vpack.c.b16 %v493, %v492
    %v524 = vpack.c.b16 %v495, %v494
    %v525 = vpack.c.b16 %v497, %v496
    %v526 = vpack.c.b16 %v499, %v498
    %v527 = vpack.c.b16 %v501, %v500
    %v528 = vpack.c.b16 %v503, %v502
    %v529 = vpack.c.b16 %v505, %v504
    %v530 = vpack.c.b16 %v507, %v506
    %v531 = vpack.c.b16 %v509, %v508
    %v532 = vpack.c.b16 %v511, %v510
    %v533 = vpack.c.b16 %v513, %v512
    %v534 = vpack.c.b16 %v515, %v514
    %v535 = vpack.c.b16 %v517, %v516
    %v536 = vpack.c.b16 %v519, %v518
    %v537 = vpack.c.b16 %v521, %v520
    %554 = vmatprep.subr.bf16.mxu0 0
    %555 = vmatpush1.bf16.msra.mxu0 %v522
    %556 = vmatprep.subr.bf16.mxu0 0
    %557 = vmatpush1.bf16.msra.mxu0 %v523
    %558 = vmatprep.subr.bf16.mxu0 0
    %559 = vmatpush1.bf16.msra.mxu0 %v524
    %560 = vmatprep.subr.bf16.mxu0 0
    %561 = vmatpush1.bf16.msra.mxu0 %v525
    %562 = vmatprep.subr.bf16.mxu0 0
    %563 = vmatpush1.bf16.msra.mxu0 %v526
    %564 = vmatprep.subr.bf16.mxu0 0
    %565 = vmatpush1.bf16.msra.mxu0 %v527
    %566 = vmatprep.subr.bf16.mxu0 0
    %567 = vmatpush1.bf16.msra.mxu0 %v528
    %568 = vmatprep.subr.bf16.mxu0 0
    %569 = vmatpush1.bf16.msra.mxu0 %v529
    %570 = vmatprep.subr.bf16.mxu0 0
    %571 = vmatpush1.bf16.msra.mxu0 %v530
    %572 = vmatprep.subr.bf16.mxu0 0
    %573 = vmatpush1.bf16.msra.mxu0 %v531
    %574 = vmatprep.subr.bf16.mxu0 0
    %575 = vmatpush1.bf16.msra.mxu0 %v532
    %576 = vmatprep.subr.bf16.mxu0 0
    %577 = vmatpush1.bf16.msra.mxu0 %v533
    %578 = vmatprep.subr.bf16.mxu0 0
    %579 = vmatpush1.bf16.msra.mxu0 %v534
    %580 = vmatprep.subr.bf16.mxu0 0
    %581 = vmatpush1.bf16.msra.mxu0 %v535
    %582 = vmatprep.subr.bf16.mxu0 0
    %583 = vmatpush1.bf16.msra.mxu0 %v536
    %584 = vmatprep.subr.bf16.mxu0 0
    %585 = vmatpush1.bf16.msra.mxu0 %v537
    %586 = vmatprep.mubr.bf16.mxu0 %v418
    %587 = vmatmul.mubr.bf16.gmra.mrb[0].mxu0 %v417
    %v588 = vpop.f32.mrb[0].mxu0
    %v589 = vadd.f32 %v456, %v588
    %v590 = vpop.f32.mrb[0].mxu0
    %v591 = vpop.f32.mrb[0].mxu0
    %v592 = vadd.f32 %v456, %v591
    %v593 = vpop.f32.mrb[0].mxu0
    %594 = vdwg.mxu0
    %v595 = vmul.f32 %v589, 0.01
    %v596 = vmul.f32 %v592, 0.01
    %v597 = vmax.f32 %v589, %v595
    %v598 = vmax.f32 %v592, %v596
    %v599 = vpack.c.bf16 %v598, %v597
    %v600 = vld [vmem:[%s5] sm:$0xf]
    %v601 = vld [vmem:[%s5 + $0x4] sm:$0xf]
    %v602 = vld [vmem:[%s5 + $0x8] sm:$0xf]
    %v603 = vld [vmem:[%s5 + $0xc] sm:$0xf]
    %v604 = vld [vmem:[%s5 + $0x10] sm:$0xf]
    %v605 = vld [vmem:[%s5 + $0x14] sm:$0xf]
    %v606 = vld [vmem:[%s5 + $0x18] sm:$0xf]
    %v607 = vld [vmem:[%s5 + $0x1c] sm:$0xf]
    %v608 = vld [vmem:[%s5 + $0x20] sm:$0xf]
    %v609 = vld [vmem:[%s5 + $0x24] sm:$0xf]
    %v610 = vld [vmem:[%s5 + $0x28] sm:$0xf]
    %v611 = vld [vmem:[%s5 + $0x2c] sm:$0xf]
    %v612 = vld [vmem:[%s5 + $0x30] sm:$0xf]
    %v613 = vld [vmem:[%s5 + $0x34] sm:$0xf]
    %v614 = vld [vmem:[%s5 + $0x38] sm:$0xf]
    %v615 = vld [vmem:[%s5 + $0x3c] sm:$0xf]
    %v616 = vld [vmem:[%s6] sm:$0x1]
    %v618 = vlaneseq
    %v619 = vshrl.u32 %v618, 7
    %v620 = vsub.s32 0, %v619
    %v621 = vrot.slane %v616, %v620
    %v639 = vunpack.c.l.b16 %v600
    %v640 = vunpack.c.l.b16 %v601
    %v641 = vunpack.c.l.b16 %v602
    %v642 = vunpack.c.l.b16 %v603
    %v643 = vunpack.c.l.b16 %v604
    %v644 = vunpack.c.l.b16 %v605
    %v645 = vunpack.c.l.b16 %v606
    %v646 = vunpack.c.l.b16 %v607
    %v647 = vunpack.c.l.b16 %v608
    %v648 = vunpack.c.l.b16 %v609
    %v649 = vunpack.c.l.b16 %v610
    %v650 = vunpack.c.l.b16 %v611
    %v651 = vunpack.c.l.b16 %v612
    %v652 = vunpack.c.l.b16 %v613
    %v653 = vunpack.c.l.b16 %v614
    %v654 = vunpack.c.l.b16 %v615
    %v655 = vpack.c.b16 %v640, %v639
    %v656 = vpack.c.b16 %v642, %v641
    %v657 = vpack.c.b16 %v644, %v643
    %v658 = vpack.c.b16 %v646, %v645
    %v659 = vpack.c.b16 %v648, %v647
    %v660 = vpack.c.b16 %v650, %v649
    %v661 = vpack.c.b16 %v652, %v651
    %v662 = vpack.c.b16 %v654, %v653
    %671 = vmatprep.subr.bf16.mxu0 0
    %672 = vmatpush1.bf16.msra.mxu0 %v655
    %673 = vmatprep.subr.bf16.mxu0 0
    %674 = vmatpush1.bf16.msra.mxu0 %v656
    %675 = vmatprep.subr.bf16.mxu0 0
    %676 = vmatpush1.bf16.msra.mxu0 %v657
    %677 = vmatprep.subr.bf16.mxu0 0
    %678 = vmatpush1.bf16.msra.mxu0 %v658
    %679 = vmatprep.subr.bf16.mxu0 0
    %680 = vmatpush1.bf16.msra.mxu0 %v659
    %681 = vmatprep.subr.bf16.mxu0 0
    %682 = vmatpush1.bf16.msra.mxu0 %v660
    %683 = vmatprep.subr.bf16.mxu0 0
    %684 = vmatpush1.bf16.msra.mxu0 %v661
    %685 = vmatprep.subr.bf16.mxu0 0
    %686 = vmatpush1.bf16.msra.mxu0 %v662
    %687 = vmatprep.subr.bf16.mxu0 0
    %688 = vmatpush1.bf16.msra.mxu0 0
    %689 = vmatprep.subr.bf16.mxu0 0
    %690 = vmatpush1.bf16.msra.mxu0 0
    %691 = vmatprep.subr.bf16.mxu0 0
    %692 = vmatpush1.bf16.msra.mxu0 0
    %693 = vmatprep.subr.bf16.mxu0 0
    %694 = vmatpush1.bf16.msra.mxu0 0
    %695 = vmatprep.subr.bf16.mxu0 0
    %696 = vmatpush1.bf16.msra.mxu0 0
    %697 = vmatprep.subr.bf16.mxu0 0
    %698 = vmatpush1.bf16.msra.mxu0 0
    %699 = vmatprep.subr.bf16.mxu0 0
    %700 = vmatpush1.bf16.msra.mxu0 0
    %701 = vmatprep.subr.bf16.mxu0 0
    %702 = vmatpush1.bf16.msra.mxu0 0
    %703 = vmatprep.mubr.bf16.mxu0 0
    %704 = vmatmul.mubr.bf16.gmra.mrb[0].mxu0 %v599
    %v705 = vpop.f32.mrb[0].mxu0
    %v706 = vadd.f32 %v621, %v705
    %v707 = vpop.f32.mrb[0].mxu0
    %v708 = vpop.f32.mrb[0].mxu0
    %v709 = vadd.f32 %v621, %v708
    %v710 = vpop.f32.mrb[0].mxu0
    %711 = vdwg.mxu0
    %v712 = vmul.f32 %v706, 0.01
    %v713 = vmul.f32 %v709, 0.01
    %v714 = vmax.f32 %v706, %v712
    %v715 = vmax.f32 %v709, %v713
    %v716 = vpack.c.bf16 %v715, %v714
    %v717 = vld [vmem:[%s7] sm:$0xf]
    %v718 = vld [vmem:[%s7 + $0x4] sm:$0xf]
    %v719 = vld [vmem:[%s7 + $0x8] sm:$0xf]
    %v720 = vld [vmem:[%s7 + $0xc] sm:$0xf]
    %v721 = vld [vmem:[%s7 + $0x10] sm:$0xf]
    %v722 = vld [vmem:[%s7 + $0x14] sm:$0xf]
    %v723 = vld [vmem:[%s7 + $0x18] sm:$0xf]
    %v724 = vld [vmem:[%s7 + $0x1c] sm:$0xf]
    %v725 = vld [vmem:[%s8] sm:$0x1]
    %v727 = vlaneseq
    %v728 = vshrl.u32 %v727, 7
    %v729 = vsub.s32 0, %v728
    %v730 = vrot.slane %v725, %v729
    %v740 = vunpack.c.l.b16 %v717
    %v741 = vunpack.c.l.b16 %v718
    %v742 = vunpack.c.l.b16 %v719
    %v743 = vunpack.c.l.b16 %v720
    %v744 = vunpack.c.l.b16 %v721
    %v745 = vunpack.c.l.b16 %v722
    %v746 = vunpack.c.l.b16 %v723
    %v747 = vunpack.c.l.b16 %v724
    %v748 = vpack.c.b16 %v741, %v740
    %v749 = vpack.c.b16 %v743, %v742
    %v750 = vpack.c.b16 %v745, %v744
    %v751 = vpack.c.b16 %v747, %v746
    %vm756 = vcmask 523264
    %v758 = vsel %vm756, %v716, 0
    %760 = vmatprep.subr.bf16.mxu0 0
    %761 = vmatpush1.bf16.msra.mxu0 %v748
    %762 = vmatprep.subr.bf16.mxu0 0
    %763 = vmatpush1.bf16.msra.mxu0 %v749
    %764 = vmatprep.subr.bf16.mxu0 0
    %765 = vmatpush1.bf16.msra.mxu0 %v750
    %766 = vmatprep.subr.bf16.mxu0 0
    %767 = vmatpush1.bf16.msra.mxu0 %v751
    %768 = vmatprep.subr.bf16.mxu0 0
    %769 = vmatpush1.bf16.msra.mxu0 0
    %770 = vmatprep.subr.bf16.mxu0 0
    %771 = vmatpush1.bf16.msra.mxu0 0
    %772 = vmatprep.subr.bf16.mxu0 0
    %773 = vmatpush1.bf16.msra.mxu0 0
    %774 = vmatprep.subr.bf16.mxu0 0
    %775 = vmatpush1.bf16.msra.mxu0 0
    %776 = vmatprep.subr.bf16.mxu0 0
    %777 = vmatpush1.bf16.msra.mxu0 0
    %778 = vmatprep.subr.bf16.mxu0 0
    %779 = vmatpush1.bf16.msra.mxu0 0
    %780 = vmatprep.subr.bf16.mxu0 0
    %781 = vmatpush1.bf16.msra.mxu0 0
    %782 = vmatprep.subr.bf16.mxu0 0
    %783 = vmatpush1.bf16.msra.mxu0 0
    %784 = vmatprep.subr.bf16.mxu0 0
    %785 = vmatpush1.bf16.msra.mxu0 0
    %786 = vmatprep.subr.bf16.mxu0 0
    %787 = vmatpush1.bf16.msra.mxu0 0
    %788 = vmatprep.subr.bf16.mxu0 0
    %789 = vmatpush1.bf16.msra.mxu0 0
    %790 = vmatprep.subr.bf16.mxu0 0
    %791 = vmatpush1.bf16.msra.mxu0 0
    %792 = vmatprep.mubr.bf16.mxu0 0
    %793 = vmatmul.mubr.bf16.gmra.mrb[0].mxu0 %v758
    %v794 = vpop.f32.mrb[0].mxu0
    %v795 = vadd.f32 %v730, %v794
    %v796 = vpop.f32.mrb[0].mxu0
    %v797 = vpop.f32.mrb[0].mxu0
    %v798 = vadd.f32 %v730, %v797
    %v799 = vpop.f32.mrb[0].mxu0
    %800 = vdwg.mxu0
    %vm801 = vcmask 64512
    %802 = vst.msk [vmem:[%s9] sm:$0xff] %vm801, %v795
    %803 = vst.msk [vmem:[%s9 + $0x8] sm:$0xff] %vm801, %v798
    // Predicated region
    $region42: #{ddc_forward.1} parent=1 // pred_check
      _
    $region43: #{ddc_forward.1} parent=1 // pred_check_branch
      %805 = sbr.rel (0) target = $region45
    $region44: #{ddc_forward.1} parent=1 // pred_region
      _
    $region45: #{ddc_forward.1} parent=1 // pred_fallthru
      _
    // Predicated region
    $region46: #{ddc_forward.1} parent=1 // pred_check
      _
    $region47: #{ddc_forward.1} parent=1 // pred_check_branch
      %807 = sbr.rel (0) target = $region49
    $region48: #{ddc_forward.1} parent=1 // pred_region
      _
    $region49: #{ddc_forward.1} parent=1 // pred_fallthru
      _
    %808 = vsyncpa [#allocation3], 1

</llo_original>
